<compile_context>
chip_gen: v7x
topology: tpu7x:2x2x1
jax: 0.10.0
libtpu: 0.0.40
codegen_flags: <defaults>
</compile_context>

<pallas_src>
import functools
import math

import jax
import jax.numpy as jnp
from jax.experimental import pallas as pl
from jax.experimental.pallas import tpu as pltpu


def _general_relu_kernel(x_ref, o_ref, *, leak, sub, maxv):
    x = x_ref[...]
    if leak is not None:
        leak_c = jnp.asarray(leak, x.dtype)
        if (isinstance(leak, (int, float)) and 0.0 <= float(leak) <= 1.0
                and jnp.issubdtype(jnp.dtype(x.dtype), jnp.floating)):
            # max(x, leak*x) == leaky_relu(x) for 0 <= leak <= 1 (one VALU op less).
            y = jnp.maximum(x, x * leak_c)
        else:
            y = jnp.where(x >= 0, x, x * leak_c)
    else:
        y = jnp.maximum(x, jnp.zeros((), x.dtype))
    if sub is not None:
        y = y - jnp.asarray(sub, x.dtype)
    if maxv is not None:
        y = jnp.minimum(y, jnp.asarray(maxv, x.dtype))
    o_ref[...] = y


def general_relu(x, leak=None, sub=None, maxv=None, *, target_tile_bytes=2 << 20):
    """Apply GeneralReLU to a tensor of any shape via a Pallas TPU kernel.

    Elementwise: flatten to a lane-dense (rows, lanes) slab (lanes a multiple
    of 128 chosen to divide the element count when possible), tile ~2 MiB
    blocks along rows with a masked boundary block, and reshape back.
    """
    orig_shape = x.shape
    total = math.prod(int(d) for d in orig_shape) if orig_shape else 1
    if total == 0:
        return x  # empty tensor: nothing to do

    flat = x.reshape(-1)

    # Lane width: largest of 1024/512/256/128 that divides `total` (no pad);
    # truly ragged totals fall back to 128 lanes with a <128-element pad.
    lanes = None
    for cand in (1024, 512, 256, 128):
        if total % cand == 0:
            lanes = cand
            break
    if lanes is None:
        lanes = 128
        padded_total = pl.cdiv(total, lanes) * lanes
        flat = jnp.pad(flat, (0, padded_total - total))
    else:
        padded_total = total

    rows = padded_total // lanes
    x2d = flat.reshape(rows, lanes)

    itemsize = jnp.dtype(x.dtype).itemsize
    # Dtype-aware tile: ~target_tile_bytes per input block, rows multiple of 8.
    block_rows = max(8, (target_tile_bytes // (lanes * itemsize)) // 8 * 8)
    if rows <= block_rows:
        if rows > 8:
            # Split mid-size inputs into >= 2 blocks so both TensorCores get
            # work on v7x (neutral on single-TC v5e/v6e).
            block_rows = ((pl.cdiv(rows, 2) + 7) // 8) * 8
        else:
            # Tiny input: single block equal to the full array extent.
            block_rows = rows
    grid = (pl.cdiv(rows, block_rows),)

    kernel = functools.partial(_general_relu_kernel, leak=leak, sub=sub, maxv=maxv)
    cost = pl.CostEstimate(
        flops=3 * padded_total,
        transcendentals=0,
        bytes_accessed=2 * padded_total * itemsize,
    )

    y2d = pl.pallas_call(
        kernel,
        out_shape=jax.ShapeDtypeStruct((rows, lanes), x.dtype),
        grid_spec=pltpu.PrefetchScalarGridSpec(
            num_scalar_prefetch=0,
            grid=grid,
            in_specs=[pl.BlockSpec((block_rows, lanes), lambda i: (i, 0))],
            out_specs=pl.BlockSpec((block_rows, lanes), lambda i: (i, 0)),
        ),
        compiler_params=pltpu.CompilerParams(
            dimension_semantics=("parallel",),
        ),
        cost_estimate=cost,
    )(x2d)

    out = y2d.reshape(-1)
    if padded_total != total:
        out = out[:total]
    return out.reshape(orig_shape)


def _reference(x, leak, sub, maxv):
    if leak is not None:
        y = jnp.where(x >= 0, x, x * jnp.asarray(leak, x.dtype))
    else:
        y = jnp.maximum(x, jnp.zeros((), x.dtype))
    if sub is not None:
        y = y - jnp.asarray(sub, x.dtype)
    if maxv is not None:
        y = jnp.minimum(y, jnp.asarray(maxv, x.dtype))
    return y


if __name__ == "__main__":
    # Deterministic config (module __init__ args are plain scalars).
    leak, sub, maxv = 0.1, 0.4, 6.0

    key = jax.random.PRNGKey(0)
    k1, k2, k3 = jax.random.split(key, 3)

    # Small NCHW input (batch=2, channels=4, 16x16) — lane-aligned fast path.
    x = jax.random.normal(k1, (2, 4, 16, 16), dtype=jnp.float32)
    y = jax.block_until_ready(general_relu(x, leak=leak, sub=sub, maxv=maxv))
    ref = _reference(x, leak, sub, maxv)
    assert y.shape == x.shape and y.dtype == x.dtype
    assert jnp.allclose(y, ref, atol=1e-6), "mismatch vs reference (aligned shape)"

    # Ragged shape (total not a multiple of 128) -> small pad + slice path.
    x2 = jax.random.normal(k2, (2, 3, 17, 19), dtype=jnp.float32)
    y2 = jax.block_until_ready(general_relu(x2, leak=leak, sub=sub, maxv=maxv))
    ref2 = _reference(x2, leak, sub, maxv)
    assert y2.shape == x2.shape and y2.dtype == x2.dtype
    assert jnp.allclose(y2, ref2, atol=1e-6), "mismatch vs reference (ragged shape)"

    # Lane-aligned but odd row count -> exercises the masked boundary block.
    x3 = jax.random.normal(k3, (3, 5, 16, 16), dtype=jnp.float32)
    y3 = jax.block_until_ready(general_relu(x3, leak=leak, sub=sub, maxv=maxv))
    ref3 = _reference(x3, leak, sub, maxv)
    assert y3.shape == x3.shape and y3.dtype == x3.dtype
    assert jnp.allclose(y3, ref3, atol=1e-6), "mismatch vs reference (boundary block)"

    # Pure-ReLU path (leak=None, sub=None, maxv=None).
    y4 = jax.block_until_ready(general_relu(x))
    assert jnp.allclose(y4, jnp.maximum(x, 0.0), atol=1e-6), "mismatch vs relu"

    print("KERNEL_OK")
</pallas_src>

<mosaic_0001>
module attributes {stable_mosaic.version = 11 : i64} {
  func.func @_general_relu_kernel(%arg0: i32, %arg1: memref<2x1024xf32, #tpu.memory_space<vmem>>, %arg2: memref<2x1024xf32, #tpu.memory_space<vmem>>) attributes {dimension_semantics = [#tpu.dimension_semantics<parallel>], iteration_bounds = array<i64: 1>, scalar_prefetch = 0 : i64, scratch_operands = 0 : i64, tpu.core_type = #tpu.core_type<tc>, window_params = [{transform_indices = @transform_0, window_bounds = array<i64: 2, 1024>}, {transform_indices = @transform_1, window_bounds = array<i64: 2, 1024>}]} {
    %c0 = arith.constant 0 : index
    %c0_0 = arith.constant 0 : index
    %0 = vector.load %arg1[%c0, %c0_0] : memref<2x1024xf32, #tpu.memory_space<vmem>>, vector<2x1024xf32>
    %cst = arith.constant 1.000000e-01 : f32
    %1 = vector.broadcast %cst : f32 to vector<2x1024xf32>
    %2 = arith.mulf %0, %1 : vector<2x1024xf32>
    %3 = arith.maximumf %0, %2 : vector<2x1024xf32>
    %cst_1 = arith.constant 4.000000e-01 : f32
    %4 = vector.broadcast %cst_1 : f32 to vector<2x1024xf32>
    %5 = arith.subf %3, %4 : vector<2x1024xf32>
    %cst_2 = arith.constant 6.000000e+00 : f32
    %6 = vector.broadcast %cst_2 : f32 to vector<2x1024xf32>
    %7 = arith.minimumf %5, %6 : vector<2x1024xf32>
    %c0_3 = arith.constant 0 : index
    %c0_4 = arith.constant 0 : index
    %8 = vector.load %arg2[%c0_3, %c0_4] : memref<2x1024xf32, #tpu.memory_space<vmem>>, vector<2x1024xf32>
    tpu.vector_store %arg2[%c0_3, %c0_4], %7 {strides = array<i32>} : memref<2x1024xf32, #tpu.memory_space<vmem>>, vector<2x1024xf32>,
    return
  }
  func.func @transform_0(%arg0: i32) -> (i32, i32) {
    %c0_i32 = arith.constant 0 : i32
    %c0_i32_0 = arith.constant 0 : i32
    return %arg0, %c0_i32 : i32, i32
  }
  func.func @transform_1(%arg0: i32) -> (i32, i32) {
    %c0_i32 = arith.constant 0 : i32
    %c0_i32_0 = arith.constant 0 : i32
    return %arg0, %c0_i32 : i32, i32
  }
}

</mosaic_0001>

<llo_original>
// kernel: tpu_custom_call.1
$region0: #{tpu_custom_call.1}
  #allocation0 [shape = 'u32[]', space=smem, size = 0x4, offset = 0x4, fixed_abs, tag = 'smem constant byte address 0x4 - core index']
  #allocation1 [shape = 'u32[144,128]{1,0:T(1,128)}', space=vmem, size = 0x12000, scoped, tag = 'internal scratch']
  %s0 = inlined_call_operand.hbm [shape: f32[2,1024], index: 0, kind: input, shape index: {}]
  %s1 = inlined_call_operand.hbm [shape: f32[2,1024], index: 1, kind: output, shape index: {}]
  %s2 = sld [smem:[#allocation0]]
  $region18: #{tpu_custom_call.1} parent=0
    _
  %s4 = ssub.s32 1, %s2
  %s5 = scalar_select 0, %s4, %s2
  $region1: #{tpu_custom_call.1} parent=0
    #allocation2 [shape = 'u8[8192]{0}', space=vmem, size = 0x2000, scoped, tag = 'input window, operand 0, single buffered']
    #allocation3 [shape = 's32[1]{0}', space=sflag, size = 0x4, scoped, tag = 'scoped memory for tpu_custom_call.1']
    #allocation4 [shape = 's32[1]{0}', space=sflag, size = 0x4, scoped, tag = 'scoped memory for tpu_custom_call.1']
    #allocation5 [shape = 'u8[8192]{0}', space=vmem, size = 0x2000, scoped, tag = 'output window, operand 0, single buffered']
    %6 = vsyncpa [#allocation3], 0
    %7 = vsyncpa [#allocation4], 0
    // Predicated region
    $region2: #{tpu_custom_call.1} parent=1 // pred_check
      _
    $region3: #{tpu_custom_call.1} parent=1 // pred_check_branch
      %9 = sbr.rel (0) target = $region5
    $region4: #{tpu_custom_call.1} parent=1 // pred_region
      %s11 = ssub.s32 256, 256
      %12 = vsyncadd [#allocation3], %s11
      %s14 = sshll.u32 [#allocation2], 4
      %s15 = int_to_ptr.vmem [resolvable:$true] %s14
      %17 = dma.hbm_to_vmem [thread:$0]  %s0, 256, %s15, [#allocation3]
    $region5: #{tpu_custom_call.1} parent=1 // pred_fallthru
      _
    // Predicated region
    $region6: #{tpu_custom_call.1} parent=1 // pred_check
      _
    $region7: #{tpu_custom_call.1} parent=1 // pred_check_branch
      %19 = sbr.rel (0) target = $region9
    $region8: #{tpu_custom_call.1} parent=1 // pred_region
      %20 = dma.done [#allocation3], 256
    $region9: #{tpu_custom_call.1} parent=1 // pred_fallthru
      _
    %v21 = vld [vmem:[#allocation2] sm:$0xff]
    %v22 = vld [vmem:[#allocation2 + $0x8] sm:$0xff]
    %v23 = vmul.f32 %v21, 0.1
    %v24 = vmul.f32 %v22, 0.1
    %v25 = vmax.f32 %v21, %v23
    %v26 = vmax.f32 %v22, %v24
    %v27 = vsub.f32 %v25, 0.4
    %v28 = vsub.f32 %v26, 0.4
    %v29 = vmin.f32 %v27, 6.0
    %v30 = vmin.f32 %v28, 6.0
    %31 = vst [vmem:[#allocation5] sm:$0xff] %v29
    %32 = vst [vmem:[#allocation5 + $0x8] sm:$0xff] %v30
    // Predicated region
    $region10: #{tpu_custom_call.1} parent=1 // pred_check
      _
    $region11: #{tpu_custom_call.1} parent=1 // pred_check_branch
      %34 = sbr.rel (0) target = $region13
    $region12: #{tpu_custom_call.1} parent=1 // pred_region
      %s36 = ssub.s32 256, 256
      %37 = vsyncadd [#allocation4], %s36
      %s39 = sshll.u32 [#allocation5], 4
      %s40 = int_to_ptr.vmem [resolvable:$true] %s39
      %42 = dma.vmem_to_hbm [thread:$0]  %s40, 256, %s1, [#allocation4]
    $region13: #{tpu_custom_call.1} parent=1 // pred_fallthru
      _
    // Predicated region
    $region14: #{tpu_custom_call.1} parent=1 // pred_check
      _
    $region15: #{tpu_custom_call.1} parent=1 // pred_check_branch
      %44 = sbr.rel (0) target = $region17
    $region16: #{tpu_custom_call.1} parent=1 // pred_region
      %45 = dma.done [#allocation4], 256
    $region17: #{tpu_custom_call.1} parent=1 // pred_fallthru
      _
    %46 = vsyncpa [#allocation3], 1
    %47 = vsyncpa [#allocation4], 1

</llo_original>
